<compile_context>
chip_gen: v7x
topology: tpu7x:2x2x1
jax: 0.10.0
libtpu: 0.0.40
codegen_flags: <defaults>
</compile_context>

<pallas_src>
import jax
import jax.numpy as jnp
from jax.experimental import pallas as pl
from jax.experimental.pallas import tpu as pltpu


def _round_up(x, m):
    return ((x + m - 1) // m) * m


# ----------------------------------------------------------------------------
# Fused kernel: mask + masked-mean pooling + pooler dense(tanh) + classifier
# ----------------------------------------------------------------------------
def fused_classifier_kernel(vl_ref, emb_ref, wp_ref, bp_ref, wc_ref, bc_ref,
                            out_ref, acc_ref):
    TB, TS, H = emb_ref.shape
    s_idx = pl.program_id(1)

    @pl.when(s_idx == 0)
    def _init():
        acc_ref[...] = jnp.zeros_like(acc_ref)

    emb = emb_ref[...]                                            # (TB, TS, H) f32
    vl = vl_ref[...]                                              # (TB, 1)    int32

    # Attention mask for this tile, built directly in (TB, TS, 1) layout so the
    # broadcast against (TB, TS, H) stays on the VPU.
    pos = jax.lax.broadcasted_iota(jnp.int32, (TB, TS, 1), 1) + s_idx * TS
    vl3 = jnp.reshape(vl, (TB, 1, 1))
    mask = (pos < vl3).astype(jnp.float32)                        # (TB, TS, 1)

    acc_ref[...] += jnp.sum(emb * mask, axis=1)                   # (TB, H) f32

    @pl.when(s_idx == pl.num_programs(1) - 1)
    def _finalize():
        # denom straight from valid_length (== sum of the mask); guard 0-length.
        denom = jnp.maximum(vl.astype(jnp.float32), 1.0)          # (TB, 1)
        pooled = acc_ref[...] * pl.reciprocal(denom, approx=True)  # (TB, H)

        pooler = jnp.tanh(
            jnp.dot(pooled.astype(jnp.bfloat16), wp_ref[...],
                    preferred_element_type=jnp.float32) + bp_ref[...])

        # dr_rate=None in the reference default -> dropout is the identity.
        out_ref[...] = (
            jnp.dot(pooler.astype(jnp.bfloat16), wc_ref[...],
                    preferred_element_type=jnp.float32) + bc_ref[...])


# ----------------------------------------------------------------------------
# Wrapper
# ----------------------------------------------------------------------------
def bert_classifier_forward(token_ids, valid_length, segment_ids, params,
                            *, tb=8, ts=128):
    B, S = token_ids.shape
    H = params["word_emb"].shape[1]
    C = params["w_cls"].shape[1]

    # ---- pad shapes to TPU-friendly tiles ----
    B_pad = _round_up(B, tb)
    ts_eff = min(ts, _round_up(S, 8))
    S_pad = _round_up(S, ts_eff)
    C_pad = _round_up(C, 128)           # lane-dense output

    tok = jnp.zeros((B_pad, S_pad), jnp.int32).at[:B, :S].set(token_ids)
    seg = jnp.zeros((B_pad, S_pad), jnp.int32).at[:B, :S].set(segment_ids)
    vl = jnp.zeros((B_pad, 1), jnp.int32).at[:B, 0].set(
        valid_length.astype(jnp.int32))

    # TODO(synk): the multi-layer BERT encoder (self.bert) is an external
    # injected module; only embedding gather (plain JAX) + pooling + pooler +
    # classifier are implemented. If the real encoder is wired in later, the
    # attention mask must be re-exported for it (it is currently fused away).
    emb = (jnp.take(params["word_emb"], tok, axis=0)
           + jnp.take(params["seg_emb"], seg, axis=0)).astype(jnp.float32)

    # bf16 weights for the MXU dots (f32 accumulation in-kernel);
    # classifier weight/bias zero-padded to a 128-wide lane-dense output.
    wp = params["w_pool"].astype(jnp.bfloat16)                      # (H, H)
    bp = params["b_pool"].astype(jnp.float32)                       # (1, H)
    wc = (jnp.zeros((H, C_pad), jnp.float32)
          .at[:, :C].set(params["w_cls"]).astype(jnp.bfloat16))     # (H, C_pad)
    bc = (jnp.zeros((1, C_pad), jnp.float32)
          .at[0, :C].set(params["b_cls"].reshape(-1)))              # (1, C_pad)

    grid = (B_pad // tb, S_pad // ts_eff)

    out_padded = pl.pallas_call(
        fused_classifier_kernel,
        out_shape=jax.ShapeDtypeStruct((B_pad, C_pad), jnp.float32),
        grid_spec=pltpu.PrefetchScalarGridSpec(
            num_scalar_prefetch=0,
            grid=grid,
            in_specs=[
                pl.BlockSpec((tb, 1), lambda i, s: (i, 0)),             # valid_length
                pl.BlockSpec((tb, ts_eff, H), lambda i, s: (i, s, 0)),  # embeddings
                pl.BlockSpec((H, H), lambda i, s: (0, 0)),              # w_pool (resident)
                pl.BlockSpec((1, H), lambda i, s: (0, 0)),              # b_pool (resident)
                pl.BlockSpec((H, C_pad), lambda i, s: (0, 0)),          # w_cls  (resident)
                pl.BlockSpec((1, C_pad), lambda i, s: (0, 0)),          # b_cls  (resident)
            ],
            out_specs=pl.BlockSpec((tb, C_pad), lambda i, s: (i, 0)),
            scratch_shapes=[pltpu.VMEM((tb, H), jnp.float32)],
        ),
        compiler_params=pltpu.CompilerParams(
            dimension_semantics=("parallel", "arbitrary")),
    )(vl, emb, wp, bp, wc, bc)

    return out_padded[:B, :C]


def init_params(key, vocab=100, n_seg=2, hidden=32, num_classes=5):
    k = jax.random.split(key, 6)
    return {
        "word_emb": jax.random.normal(k[0], (vocab, hidden), jnp.float32) * 0.02,
        "seg_emb":  jax.random.normal(k[1], (n_seg, hidden), jnp.float32) * 0.02,
        "w_pool":   jax.random.normal(k[2], (hidden, hidden), jnp.float32) * 0.05,
        "b_pool":   jax.random.normal(k[3], (1, hidden), jnp.float32) * 0.01,
        "w_cls":    jax.random.normal(k[4], (hidden, num_classes), jnp.float32) * 0.05,
        "b_cls":    jax.random.normal(k[5], (1, num_classes), jnp.float32) * 0.01,
    }


if __name__ == "__main__":
    B, S, H, C, V = 2, 8, 32, 5, 100

    key = jax.random.PRNGKey(0)
    kp, kt, ks, kv = jax.random.split(key, 4)

    params = init_params(kp, vocab=V, hidden=H, num_classes=C)
    token_ids = jax.random.randint(kt, (B, S), 0, V, dtype=jnp.int32)
    segment_ids = jax.random.randint(ks, (B, S), 0, 2, dtype=jnp.int32)
    valid_length = jax.random.randint(kv, (B,), 1, S + 1, dtype=jnp.int32)

    logits = bert_classifier_forward(token_ids, valid_length, segment_ids, params)
    jax.block_until_ready(logits)
    assert logits.shape == (B, C) and logits.dtype == jnp.float32
    print("KERNEL_OK")
</pallas_src>

<mosaic_0001>
module attributes {stable_mosaic.version = 11 : i64} {
  func.func @fused_classifier_kernel(%arg0: i32, %arg1: i32, %arg2: memref<8x1xi32, #tpu.memory_space<vmem>>, %arg3: memref<8x8x32xf32, #tpu.memory_space<vmem>>, %arg4: memref<32x32xbf16, #tpu.memory_space<vmem>>, %arg5: memref<1x32xf32, #tpu.memory_space<vmem>>, %arg6: memref<32x128xbf16, #tpu.memory_space<vmem>>, %arg7: memref<1x128xf32, #tpu.memory_space<vmem>>, %arg8: memref<8x128xf32, #tpu.memory_space<vmem>>, %arg9: memref<8x32xf32, #tpu.memory_space<vmem>>) attributes {dimension_semantics = [#tpu.dimension_semantics<parallel>, #tpu.dimension_semantics<arbitrary>], iteration_bounds = array<i64: 1, 1>, scalar_prefetch = 0 : i64, scratch_operands = 1 : i64, tpu.core_type = #tpu.core_type<tc>, window_params = [{transform_indices = @transform_0, window_bounds = array<i64: 8, 1>}, {transform_indices = @transform_1, window_bounds = array<i64: 8, 8, 32>}, {pipeline_mode = #tpu.pipeline_mode<synchronous>, transform_indices = @transform_2, window_bounds = array<i64: 32, 32>}, {pipeline_mode = #tpu.pipeline_mode<synchronous>, transform_indices = @transform_3, window_bounds = array<i64: 1, 32>}, {pipeline_mode = #tpu.pipeline_mode<synchronous>, transform_indices = @transform_4, window_bounds = array<i64: 32, 128>}, {pipeline_mode = #tpu.pipeline_mode<synchronous>, transform_indices = @transform_5, window_bounds = array<i64: 1, 128>}, {transform_indices = @transform_6, window_bounds = array<i64: 8, 128>}]} {
    %c0_i32 = arith.constant 0 : i32
    %0 = arith.cmpi eq, %arg1, %c0_i32 : i32
    %1 = arith.extui %0 : i1 to i32
    %c0_i32_0 = arith.constant 0 : i32
    %2 = arith.cmpi ne, %1, %c0_i32_0 : i32
    scf.if %2 {
      %cst_11 = arith.constant 0.000000e+00 : f32
      %23 = vector.broadcast %cst_11 : f32 to vector<8x32xf32>
      %c0_12 = arith.constant 0 : index
      %c0_13 = arith.constant 0 : index
      %24 = vector.load %arg9[%c0_12, %c0_13] : memref<8x32xf32, #tpu.memory_space<vmem>>, vector<8x32xf32>
      tpu.vector_store %arg9[%c0_12, %c0_13], %23 {strides = array<i32>} : memref<8x32xf32, #tpu.memory_space<vmem>>, vector<8x32xf32>,
    } else {
    }
    %c0 = arith.constant 0 : index
    %c0_1 = arith.constant 0 : index
    %c0_2 = arith.constant 0 : index
    %3 = vector.load %arg3[%c0, %c0_1, %c0_2] : memref<8x8x32xf32, #tpu.memory_space<vmem>>, vector<8x8x32xf32>
    %c0_3 = arith.constant 0 : index
    %c0_4 = arith.constant 0 : index
    %4 = vector.load %arg2[%c0_3, %c0_4] : memref<8x1xi32, #tpu.memory_space<vmem>>, vector<8x1xi32>
    %5 = tpu.iota {dimensions = array<i32: 1>} : vector<8x8x1xi32>
    %c8_i32 = arith.constant 8 : i32
    %6 = arith.muli %arg1, %c8_i32 : i32
    %7 = vector.broadcast %6 : i32 to vector<8x8x1xi32>
    %8 = arith.addi %5, %7 : vector<8x8x1xi32>
    %9 = vector.shape_cast %4 : vector<8x1xi32> to vector<8x1x1xi32>
    %10 = vector.broadcast %9 : vector<8x1x1xi32> to vector<8x8x1xi32>
    %11 = arith.cmpi slt, %8, %10 : vector<8x8x1xi32>
    %12 = arith.extui %11 : vector<8x8x1xi1> to vector<8x8x1xi32>
    %13 = arith.sitofp %12 : vector<8x8x1xi32> to vector<8x8x1xf32>
    %c0_5 = arith.constant 0 : index
    %c0_6 = arith.constant 0 : index
    %14 = vector.load %arg9[%c0_5, %c0_6] : memref<8x32xf32, #tpu.memory_space<vmem>>, vector<8x32xf32>
    %15 = vector.broadcast %13 : vector<8x8x1xf32> to vector<8x8x32xf32>
    %16 = arith.mulf %3, %15 : vector<8x8x32xf32>
    %cst = arith.constant dense<0.000000e+00> : vector<8x32xf32>
    %17 = vector.multi_reduction <add>, %16, %cst [1] : vector<8x8x32xf32> to vector<8x32xf32>
    %18 = arith.addf %14, %17 : vector<8x32xf32>
    %c0_7 = arith.constant 0 : index
    %c0_8 = arith.constant 0 : index
    %19 = vector.load %arg9[%c0_7, %c0_8] : memref<8x32xf32, #tpu.memory_space<vmem>>, vector<8x32xf32>
    tpu.vector_store %arg9[%c0_7, %c0_8], %18 {strides = array<i32>} : memref<8x32xf32, #tpu.memory_space<vmem>>, vector<8x32xf32>,
    %c0_i32_9 = arith.constant 0 : i32
    %20 = arith.cmpi eq, %arg1, %c0_i32_9 : i32
    %21 = arith.extui %20 : i1 to i32
    %c0_i32_10 = arith.constant 0 : i32
    %22 = arith.cmpi ne, %21, %c0_i32_10 : i32
    scf.if %22 {
      %23 = arith.sitofp %4 : vector<8x1xi32> to vector<8x1xf32>
      %cst_11 = arith.constant 1.000000e+00 : f32
      %24 = vector.broadcast %cst_11 : f32 to vector<8x1xf32>
      %25 = arith.maximumf %23, %24 : vector<8x1xf32>
      %c0_12 = arith.constant 0 : index
      %c0_13 = arith.constant 0 : index
      %26 = vector.load %arg9[%c0_12, %c0_13] : memref<8x32xf32, #tpu.memory_space<vmem>>, vector<8x32xf32>
      %27 = tpu.reciprocal %25 {approx = true} : vector<8x1xf32> -> vector<8x1xf32>
      %28 = vector.broadcast %27 : vector<8x1xf32> to vector<8x32xf32>
      %29 = arith.mulf %26, %28 : vector<8x32xf32>
      %30 = arith.truncf %29 : vector<8x32xf32> to vector<8x32xbf16>
      %c0_14 = arith.constant 0 : index
      %c0_15 = arith.constant 0 : index
      %31 = vector.load %arg4[%c0_14, %c0_15] : memref<32x32xbf16, #tpu.memory_space<vmem>>, vector<32x32xbf16>
      %cst_16 = arith.constant dense<0.000000e+00> : vector<8x32xf32>
      %32 = tpu.matmul %30, %31, %cst_16 {dimension_numbers = #tpu.dot_dimension_numbers<[1], [0], [0], [1], [0, 0, 1, 1], [], []>} : vector<8x32xbf16>, vector<32x32xbf16>, vector<8x32xf32> -> vector<8x32xf32>
      %c0_17 = arith.constant 0 : index
      %c0_18 = arith.constant 0 : index
      %33 = vector.load %arg5[%c0_17, %c0_18] : memref<1x32xf32, #tpu.memory_space<vmem>>, vector<1x32xf32>
      %34 = vector.broadcast %33 : vector<1x32xf32> to vector<8x32xf32>
      %35 = arith.addf %32, %34 : vector<8x32xf32>
      %36 = math.tanh %35 : vector<8x32xf32>
      %37 = arith.truncf %36 : vector<8x32xf32> to vector<8x32xbf16>
      %c0_19 = arith.constant 0 : index
      %c0_20 = arith.constant 0 : index
      %38 = vector.load %arg6[%c0_19, %c0_20] : memref<32x128xbf16, #tpu.memory_space<vmem>>, vector<32x128xbf16>
      %cst_21 = arith.constant dense<0.000000e+00> : vector<8x128xf32>
      %39 = tpu.matmul %37, %38, %cst_21 {dimension_numbers = #tpu.dot_dimension_numbers<[1], [0], [0], [1], [0, 0, 1, 1], [], []>} : vector<8x32xbf16>, vector<32x128xbf16>, vector<8x128xf32> -> vector<8x128xf32>
      %c0_22 = arith.constant 0 : index
      %c0_23 = arith.constant 0 : index
      %40 = vector.load %arg7[%c0_22, %c0_23] : memref<1x128xf32, #tpu.memory_space<vmem>>, vector<1x128xf32>
      %41 = vector.broadcast %40 : vector<1x128xf32> to vector<8x128xf32>
      %42 = arith.addf %39, %41 : vector<8x128xf32>
      %c0_24 = arith.constant 0 : index
      %c0_25 = arith.constant 0 : index
      %43 = vector.load %arg8[%c0_24, %c0_25] : memref<8x128xf32, #tpu.memory_space<vmem>>, vector<8x128xf32>
      tpu.vector_store %arg8[%c0_24, %c0_25], %42 {strides = array<i32>} : memref<8x128xf32, #tpu.memory_space<vmem>>, vector<8x128xf32>,
    } else {
    }
    return
  }
  func.func @transform_0(%arg0: i32, %arg1: i32) -> (i32, i32) {
    %c0_i32 = arith.constant 0 : i32
    %c0_i32_0 = arith.constant 0 : i32
    return %arg0, %c0_i32 : i32, i32
  }
  func.func @transform_1(%arg0: i32, %arg1: i32) -> (i32, i32, i32) {
    %c0_i32 = arith.constant 0 : i32
    %c0_i32_0 = arith.constant 0 : i32
    return %arg0, %arg1, %c0_i32 : i32, i32, i32
  }
  func.func @transform_2(%arg0: i32, %arg1: i32) -> (i32, i32) {
    %c0_i32 = arith.constant 0 : i32
    %c0_i32_0 = arith.constant 0 : i32
    %c0_i32_1 = arith.constant 0 : i32
    return %c0_i32, %c0_i32_0 : i32, i32
  }
  func.func @transform_3(%arg0: i32, %arg1: i32) -> (i32, i32) {
    %c0_i32 = arith.constant 0 : i32
    %c0_i32_0 = arith.constant 0 : i32
    %c0_i32_1 = arith.constant 0 : i32
    return %c0_i32, %c0_i32_0 : i32, i32
  }
  func.func @transform_4(%arg0: i32, %arg1: i32) -> (i32, i32) {
    %c0_i32 = arith.constant 0 : i32
    %c0_i32_0 = arith.constant 0 : i32
    %c0_i32_1 = arith.constant 0 : i32
    return %c0_i32, %c0_i32_0 : i32, i32
  }
  func.func @transform_5(%arg0: i32, %arg1: i32) -> (i32, i32) {
    %c0_i32 = arith.constant 0 : i32
    %c0_i32_0 = arith.constant 0 : i32
    %c0_i32_1 = arith.constant 0 : i32
    return %c0_i32, %c0_i32_0 : i32, i32
  }
  func.func @transform_6(%arg0: i32, %arg1: i32) -> (i32, i32) {
    %c0_i32 = arith.constant 0 : i32
    %c0_i32_0 = arith.constant 0 : i32
    return %arg0, %c0_i32 : i32, i32
  }
}

</mosaic_0001>

<llo_original>
// kernel: tpu_custom_call.1
$region0: #{tpu_custom_call.1}
  #allocation0 [shape = 'u32[]', space=smem, size = 0x4, offset = 0x4, fixed_abs, tag = 'smem constant byte address 0x4 - core index']
  #allocation1 [shape = 'u32[144,128]{1,0:T(1,128)}', space=vmem, size = 0x12000, scoped, tag = 'internal scratch']
  #allocation2 [shape = 'f32[8,32]{1,0:T(8,128)}', space=vmem, size = 0x1000, scoped, tag = 'scratch operand']
  %s0 = inlined_call_operand.vmem [shape: s32[8,1], index: 0, kind: input, shape index: {}]
  %s1 = inlined_call_operand.hbm [shape: f32[8,8,32], index: 1, kind: input, shape index: {}]
  %s2 = inlined_call_operand.vmem [shape: bf16[32,32], index: 2, kind: input, shape index: {}]
  %s3 = inlined_call_operand.vmem [shape: f32[1,32], index: 3, kind: input, shape index: {}]
  %s4 = inlined_call_operand.hbm [shape: bf16[32,128], index: 4, kind: input, shape index: {}]
  %s5 = inlined_call_operand.vmem [shape: f32[1,128], index: 5, kind: input, shape index: {}]
  %s6 = inlined_call_operand.hbm [shape: f32[8,128], index: 6, kind: output, shape index: {}]
  %s7 = sld [smem:[#allocation0]]
  $region50: #{tpu_custom_call.1} parent=0
    _
  %s9 = ssub.s32 1, %s7
  %s10 = scalar_select 0, %s9, %s7
  $region1: #{tpu_custom_call.1} parent=0
    #allocation3 [shape = 'u8[32768]{0}', space=vmem, size = 0x8000, scoped, tag = 'input window, operand 1, single buffered']
    #allocation4 [shape = 's32[1]{0}', space=sflag, size = 0x4, scoped, tag = 'scoped memory for tpu_custom_call.1']
    #allocation5 [shape = 's32[1]{0}', space=sflag, size = 0x4, scoped, tag = 'scoped memory for tpu_custom_call.1']
    #allocation6 [shape = 'u8[8192]{0}', space=vmem, size = 0x2000, scoped, tag = 'input window, operand 4, single buffered']
    #allocation7 [shape = 's32[1]{0}', space=sflag, size = 0x4, scoped, tag = 'scoped memory for tpu_custom_call.1']
    #allocation8 [shape = 'u8[4096]{0}', space=vmem, size = 0x1000, scoped, tag = 'output window, operand 0, single buffered']
    %11 = vsyncpa [#allocation4], 0
    %12 = vsyncpa [#allocation7], 0
    %13 = vsyncpa [#allocation5], 0
    // Predicated region
    $region2: #{tpu_custom_call.1} parent=1 // pred_check
      _
    $region3: #{tpu_custom_call.1} parent=1 // pred_check_branch
      %15 = sbr.rel (0) target = $region5
    $region4: #{tpu_custom_call.1} parent=1 // pred_region
      _
    $region5: #{tpu_custom_call.1} parent=1 // pred_fallthru
      _
    // Predicated region
    $region6: #{tpu_custom_call.1} parent=1 // pred_check
      _
    $region7: #{tpu_custom_call.1} parent=1 // pred_check_branch
      %17 = sbr.rel (0) target = $region9
    $region8: #{tpu_custom_call.1} parent=1 // pred_region
      %s19 = ssub.s32 1024, 1024
      %20 = vsyncadd [#allocation4], %s19
      %s21 = sshll.u32 [#allocation3], 4
      %s22 = int_to_ptr.vmem [resolvable:$true] %s21
      %27 = dma.hbm_to_vmem [thread:$0]  %s1, 1024, %s22, [#allocation4], 128, 128, 8
    $region9: #{tpu_custom_call.1} parent=1 // pred_fallthru
      _
    // Predicated region
    $region10: #{tpu_custom_call.1} parent=1 // pred_check
      _
    $region11: #{tpu_custom_call.1} parent=1 // pred_check_branch
      %29 = sbr.rel (0) target = $region13
    $region12: #{tpu_custom_call.1} parent=1 // pred_region
      _
    $region13: #{tpu_custom_call.1} parent=1 // pred_fallthru
      _
    // Predicated region
    $region14: #{tpu_custom_call.1} parent=1 // pred_check
      _
    $region15: #{tpu_custom_call.1} parent=1 // pred_check_branch
      %31 = sbr.rel (0) target = $region17
    $region16: #{tpu_custom_call.1} parent=1 // pred_region
      _
    $region17: #{tpu_custom_call.1} parent=1 // pred_fallthru
      _
    // Predicated region
    $region18: #{tpu_custom_call.1} parent=1 // pred_check
      _
    $region19: #{tpu_custom_call.1} parent=1 // pred_check_branch
      %33 = sbr.rel (0) target = $region21
    $region20: #{tpu_custom_call.1} parent=1 // pred_region
      %s35 = ssub.s32 256, 256
      %36 = vsyncadd [#allocation7], %s35
      %s37 = sshll.u32 [#allocation6], 4
      %s38 = int_to_ptr.vmem [resolvable:$true] %s37
      %43 = dma.hbm_to_vmem [thread:$0]  %s4, 256, %s38, [#allocation7], 64, 64, 4
    $region21: #{tpu_custom_call.1} parent=1 // pred_fallthru
      _
    // Predicated region
    $region22: #{tpu_custom_call.1} parent=1 // pred_check
      _
    $region23: #{tpu_custom_call.1} parent=1 // pred_check_branch
      %45 = sbr.rel (0) target = $region25
    $region24: #{tpu_custom_call.1} parent=1 // pred_region
      _
    $region25: #{tpu_custom_call.1} parent=1 // pred_fallthru
      _
    // Predicated region
    $region26: #{tpu_custom_call.1} parent=1 // pred_check
      _
    $region27: #{tpu_custom_call.1} parent=1 // pred_check_branch
      %47 = sbr.rel (0) target = $region29
    $region28: #{tpu_custom_call.1} parent=1 // pred_region
      %48 = dma.done [#allocation4], 1024
    $region29: #{tpu_custom_call.1} parent=1 // pred_fallthru
      _
    // Predicated region
    $region30: #{tpu_custom_call.1} parent=1 // pred_check
      _
    $region31: #{tpu_custom_call.1} parent=1 // pred_check_branch
      %50 = sbr.rel (0) target = $region33
    $region32: #{tpu_custom_call.1} parent=1 // pred_region
      %51 = dma.done [#allocation7], 256
    $region33: #{tpu_custom_call.1} parent=1 // pred_fallthru
      _
    %p53 = scmp.eq.s32.totalorder 0, 0
    // Predicated region
    $region34: #{tpu_custom_call.1} parent=1 // pred_check
      %p54 = pneg %p53
    $region35: #{tpu_custom_call.1} parent=1 // pred_check_branch
      %56 = sbr.rel (%p54) target = $region37
    $region36: #{tpu_custom_call.1} parent=1 // pred_region
      %vm57 = vcmask 261120
      %58 = vst.msk [vmem:[#allocation2] sm:$0xff] %vm57, 0.0
    $region37: #{tpu_custom_call.1} parent=1 // pred_fallthru
      _
    %v59 = vld [vmem:[#allocation3] sm:$0xff]
    %v60 = vld [vmem:[#allocation3 + $0x8] sm:$0xff]
    %v61 = vld [vmem:[#allocation3 + $0x10] sm:$0xff]
    %v62 = vld [vmem:[#allocation3 + $0x18] sm:$0xff]
    %v63 = vld [vmem:[#allocation3 + $0x20] sm:$0xff]
    %v64 = vld [vmem:[#allocation3 + $0x28] sm:$0xff]
    %v65 = vld [vmem:[#allocation3 + $0x30] sm:$0xff]
    %v66 = vld [vmem:[#allocation3 + $0x38] sm:$0xff]
    %v67 = vld [vmem:[%s0] sm:$0xff]
    %v68 = vlaneseq
    %v69 = vshrl.u32 %v68, 7
    %s70 = smul.u32 0, 8
    %v71 = vstv %s70
    %v72 = vadd.s32 %v69, %v71
    %v73 = vcombine.high %v67, %v67
    %v75 = vunpack.c.l.s4 1966171168
    %v76 = vunpack.c.0.s8 %v75
    %v77 = vlaneseq
    %v78 = vshrl.u32 %v77, 7
    %v79 = vsub.s32 %v76, %v78
    %v80 = vrot.slane %v67, %v79
    %v82 = vunpack.c.l.s4 1966171168
    %v83 = vunpack.c.0.s8 %v82
    %v84 = vlaneseq
    %v85 = vshrl.u32 %v84, 7
    %v86 = vsub.s32 %v83, %v85
    %v87 = vrot.slane %v73, %v86
    %v88 = vcombine.high %v80, %v80
    %v89 = vcombine.high %v87, %v87
    %v91 = vunpack.c.l.s4 1966171168
    %v92 = vunpack.c.0.s8 %v91
    %v93 = vlaneseq
    %v94 = vshrl.u32 %v93, 7
    %v95 = vsub.s32 %v92, %v94
    %v96 = vrot.slane %v80, %v95
    %v98 = vunpack.c.l.s4 1966171168
    %v99 = vunpack.c.0.s8 %v98
    %v100 = vlaneseq
    %v101 = vshrl.u32 %v100, 7
    %v102 = vsub.s32 %v99, %v101
    %v103 = vrot.slane %v87, %v102
    %v105 = vunpack.c.l.s4 1966171168
    %v106 = vunpack.c.0.s8 %v105
    %v107 = vlaneseq
    %v108 = vshrl.u32 %v107, 7
    %v109 = vsub.s32 %v106, %v108
    %v110 = vrot.slane %v88, %v109
    %v112 = vunpack.c.l.s4 1966171168
    %v113 = vunpack.c.0.s8 %v112
    %v114 = vlaneseq
    %v115 = vshrl.u32 %v114, 7
    %v116 = vsub.s32 %v113, %v115
    %v117 = vrot.slane %v89, %v116
    %v118 = vcombine.high %v96, %v96
    %v119 = vcombine.high %v103, %v103
    %v120 = vcombine.high %v110, %v110
    %v121 = vcombine.high %v117, %v117
    %v122 = vlaneseq
    %v123 = vshrl.u32 %v122, 7
    %v124 = vsub.s32 0, %v123
    %v125 = vrot.slane %v96, %v124
    %v126 = vlaneseq
    %v127 = vshrl.u32 %v126, 7
    %v128 = vsub.s32 0, %v127
    %v129 = vrot.slane %v110, %v128
    %v130 = vlaneseq
    %v131 = vshrl.u32 %v130, 7
    %v132 = vsub.s32 0, %v131
    %v133 = vrot.slane %v118, %v132
    %v134 = vlaneseq
    %v135 = vshrl.u32 %v134, 7
    %v136 = vsub.s32 0, %v135
    %v137 = vrot.slane %v120, %v136
    %v138 = vlaneseq
    %v139 = vshrl.u32 %v138, 7
    %v140 = vsub.s32 0, %v139
    %v141 = vrot.slane %v103, %v140
    %v142 = vlaneseq
    %v143 = vshrl.u32 %v142, 7
    %v144 = vsub.s32 0, %v143
    %v145 = vrot.slane %v117, %v144
    %v146 = vlaneseq
    %v147 = vshrl.u32 %v146, 7
    %v148 = vsub.s32 0, %v147
    %v149 = vrot.slane %v119, %v148
    %v150 = vlaneseq
    %v151 = vshrl.u32 %v150, 7
    %v152 = vsub.s32 0, %v151
    %v153 = vrot.slane %v121, %v152
    %vm154 = vcmp.lt.s32.totalorder %v72, %v125
    %vm155 = vcmp.lt.s32.totalorder %v72, %v129
    %vm156 = vcmp.lt.s32.totalorder %v72, %v133
    %vm157 = vcmp.lt.s32.totalorder %v72, %v137
    %vm158 = vcmp.lt.s32.totalorder %v72, %v141
    %vm159 = vcmp.lt.s32.totalorder %v72, %v145
    %vm160 = vcmp.lt.s32.totalorder %v72, %v149
    %vm161 = vcmp.lt.s32.totalorder %v72, %v153
    %v162 = vsel %vm154, 1, 0
    %v163 = vsel %vm155, 1, 0
    %v164 = vsel %vm156, 1, 0
    %v165 = vsel %vm157, 1, 0
    %v166 = vsel %vm158, 1, 0
    %v167 = vsel %vm159, 1, 0
    %v168 = vsel %vm160, 1, 0
    %v169 = vsel %vm161, 1, 0
    %v170 = vcvt.s32.f32 %v162
    %v171 = vcvt.s32.f32 %v163
    %v172 = vcvt.s32.f32 %v164
    %v173 = vcvt.s32.f32 %v165
    %v174 = vcvt.s32.f32 %v166
    %v175 = vcvt.s32.f32 %v167
    %v176 = vcvt.s32.f32 %v168
    %v177 = vcvt.s32.f32 %v169
    %v178 = vld [vmem:[#allocation2] sm:$0xff]
    %180 = vset.pattern.permute.xlu0 0
    %181 = vperm.xlu0 %180, %v170
    %v182 = vpop.permute.xlu0 %181
    %185 = vset.pattern.permute.xlu0 0
    %186 = vperm.xlu0 %185, %v171
    %v187 = vpop.permute.xlu0 %186
    %190 = vset.pattern.permute.xlu0 0
    %191 = vperm.xlu0 %190, %v172
    %v192 = vpop.permute.xlu0 %191
    %195 = vset.pattern.permute.xlu0 0
    %196 = vperm.xlu0 %195, %v173
    %v197 = vpop.permute.xlu0 %196
    %200 = vset.pattern.permute.xlu0 0
    %201 = vperm.xlu0 %200, %v174
    %v202 = vpop.permute.xlu0 %201
    %205 = vset.pattern.permute.xlu0 0
    %206 = vperm.xlu0 %205, %v175
    %v207 = vpop.permute.xlu0 %206
    %210 = vset.pattern.permute.xlu0 0
    %211 = vperm.xlu0 %210, %v176
    %v212 = vpop.permute.xlu0 %211
    %215 = vset.pattern.permute.xlu0 0
    %216 = vperm.xlu0 %215, %v177
    %v217 = vpop.permute.xlu0 %216
    %v219 = vmul.f32 %v59, %v182
    %v220 = vmul.f32 %v60, %v187
    %v221 = vmul.f32 %v61, %v192
    %v222 = vmul.f32 %v62, %v197
    %v223 = vmul.f32 %v63, %v202
    %v224 = vmul.f32 %v64, %v207
    %v225 = vmul.f32 %v65, %v212
    %v226 = vmul.f32 %v66, %v217
    %vm227 = vcmask 261120
    %v228 = vsel %vm227, %v219, 0.0
    %v229 = vrot.slane %v228, 4
    %v230 = vadd.f32 %v228, %v229
    %v231 = vrot.slane %v230, 2
    %v232 = vadd.f32 %v230, %v231
    %v233 = vrot.slane %v232, 1
    %v234 = vadd.f32 %v232, %v233
    %v235 = vsel %vm227, %v220, 0.0
    %v236 = vrot.slane %v235, 4
    %v237 = vadd.f32 %v235, %v236
    %v238 = vrot.slane %v237, 2
    %v239 = vadd.f32 %v237, %v238
    %v240 = vrot.slane %v239, 1
    %v241 = vadd.f32 %v239, %v240
    %v242 = vsel %vm227, %v221, 0.0
    %v243 = vrot.slane %v242, 4
    %v244 = vadd.f32 %v242, %v243
    %v245 = vrot.slane %v244, 2
    %v246 = vadd.f32 %v244, %v245
    %v247 = vrot.slane %v246, 1
    %v248 = vadd.f32 %v246, %v247
    %v249 = vsel %vm227, %v222, 0.0
    %v250 = vrot.slane %v249, 4
    %v251 = vadd.f32 %v249, %v250
    %v252 = vrot.slane %v251, 2
    %v253 = vadd.f32 %v251, %v252
    %v254 = vrot.slane %v253, 1
    %v255 = vadd.f32 %v253, %v254
    %v256 = vsel %vm227, %v223, 0.0
    %v257 = vrot.slane %v256, 4
    %v258 = vadd.f32 %v256, %v257
    %v259 = vrot.slane %v258, 2
    %v260 = vadd.f32 %v258, %v259
    %v261 = vrot.slane %v260, 1
    %v262 = vadd.f32 %v260, %v261
    %v263 = vsel %vm227, %v224, 0.0
    %v264 = vrot.slane %v263, 4
    %v265 = vadd.f32 %v263, %v264
    %v266 = vrot.slane %v265, 2
    %v267 = vadd.f32 %v265, %v266
    %v268 = vrot.slane %v267, 1
    %v269 = vadd.f32 %v267, %v268
    %v270 = vsel %vm227, %v225, 0.0
    %v271 = vrot.slane %v270, 4
    %v272 = vadd.f32 %v270, %v271
    %v273 = vrot.slane %v272, 2
    %v274 = vadd.f32 %v272, %v273
    %v275 = vrot.slane %v274, 1
    %v276 = vadd.f32 %v274, %v275
    %v277 = vsel %vm227, %v226, 0.0
    %v278 = vrot.slane %v277, 4
    %v279 = vadd.f32 %v277, %v278
    %v280 = vrot.slane %v279, 2
    %v281 = vadd.f32 %v279, %v280
    %v282 = vrot.slane %v281, 1
    %v283 = vadd.f32 %v281, %v282
    %vm292 = vcmask 1041409
    %v293 = vsel %vm292, %v241, %v234
    %vm294 = vcmask 1042434
    %v295 = vsel %vm294, %v248, %v293
    %vm296 = vcmask 1043459
    %v297 = vsel %vm296, %v255, %v295
    %vm298 = vcmask 1044484
    %v299 = vsel %vm298, %v262, %v297
    %vm300 = vcmask 1045509
    %v301 = vsel %vm300, %v269, %v299
    %vm302 = vcmask 1046534
    %v303 = vsel %vm302, %v276, %v301
    %vm304 = vcmask 1047559
    %v305 = vsel %vm304, %v283, %v303
    %v307 = vadd.f32 %v178, %v305
    %308 = vst.msk [vmem:[#allocation2] sm:$0xff] %vm227, %v307
    // Predicated region
    $region38: #{tpu_custom_call.1} parent=1 // pred_check
      %p309 = pneg %p53
    $region39: #{tpu_custom_call.1} parent=1 // pred_check_branch
      %311 = sbr.rel (%p309) target = $region41
    $region40: #{tpu_custom_call.1} parent=1 // pred_region
      %v312 = vcvt.s32.f32 %v67
      %v313 = vmax.f32 %v312, 1.0
      %v314 = vld [vmem:[#allocation2] sm:$0xff]
      %v315 = vrcp.pop %v313
      %317 = vset.pattern.permute.xlu0 0
      %318 = vperm.xlu0 %317, %v315
      %v319 = vpop.permute.xlu0 %318
      %v321 = vmul.f32 %v314, %v319
      %v322 = vpack.c.bf16 %v321, %v321
      %v323 = vld [vmem:[%s2] sm:$0xf]
      %v324 = vld [vmem:[%s2 + $0x4] sm:$0xf]
      %v325 = vld [vmem:[%s2 + $0x8] sm:$0xf]
      %v326 = vld [vmem:[%s2 + $0xc] sm:$0xf]
      %v327 = vld [vmem:[%s3] sm:$0x1]
      %v329 = vlaneseq
      %v330 = vshrl.u32 %v329, 7
      %v331 = vsub.s32 0, %v330
      %v332 = vrot.slane %v327, %v331
      %v338 = vunpack.c.l.b16 %v323
      %v339 = vunpack.c.l.b16 %v324
      %v340 = vunpack.c.l.b16 %v325
      %v341 = vunpack.c.l.b16 %v326
      %v342 = vpack.c.b16 %v339, %v338
      %v343 = vpack.c.b16 %v341, %v340
      %v347 = vsel %vm227, %v322, 0
      %349 = vmatprep.subr.bf16.mxu0 0
      %350 = vmatpush1.bf16.msra.mxu0 %v342
      %351 = vmatprep.subr.bf16.mxu0 0
      %352 = vmatpush1.bf16.msra.mxu0 %v343
      %353 = vmatprep.subr.bf16.mxu0 0
      %354 = vmatpush1.bf16.msra.mxu0 0
      %355 = vmatprep.subr.bf16.mxu0 0
      %356 = vmatpush1.bf16.msra.mxu0 0
      %357 = vmatprep.subr.bf16.mxu0 0
      %358 = vmatpush1.bf16.msra.mxu0 0
      %359 = vmatprep.subr.bf16.mxu0 0
      %360 = vmatpush1.bf16.msra.mxu0 0
      %361 = vmatprep.subr.bf16.mxu0 0
      %362 = vmatpush1.bf16.msra.mxu0 0
      %363 = vmatprep.subr.bf16.mxu0 0
      %364 = vmatpush1.bf16.msra.mxu0 0
      %365 = vmatprep.subr.bf16.mxu0 0
      %366 = vmatpush1.bf16.msra.mxu0 0
      %367 = vmatprep.subr.bf16.mxu0 0
      %368 = vmatpush1.bf16.msra.mxu0 0
      %369 = vmatprep.subr.bf16.mxu0 0
      %370 = vmatpush1.bf16.msra.mxu0 0
      %371 = vmatprep.subr.bf16.mxu0 0
      %372 = vmatpush1.bf16.msra.mxu0 0
      %373 = vmatprep.subr.bf16.mxu0 0
      %374 = vmatpush1.bf16.msra.mxu0 0
      %375 = vmatprep.subr.bf16.mxu0 0
      %376 = vmatpush1.bf16.msra.mxu0 0
      %377 = vmatprep.subr.bf16.mxu0 0
      %378 = vmatpush1.bf16.msra.mxu0 0
      %379 = vmatprep.subr.bf16.mxu0 0
      %380 = vmatpush1.bf16.msra.mxu0 0
      %381 = vmatprep.mubr.bf16.mxu0 0
      %382 = vmatmul.mubr.bf16.gmra.mrb[0].mxu0 %v347
      %v383 = vpop.f32.mrb[0].mxu0
      %v384 = vadd.f32 %v332, %v383
      %v385 = vpop.f32.mrb[0].mxu0
      %v386 = vpop.f32.mrb[0].mxu0
      %v387 = vpop.f32.mrb[0].mxu0
      %388 = vdwg.mxu0
      %v389 = vtanh.pop %v384
      %v390 = vpack.c.bf16 %v389, %v389
      %v391 = vld [vmem:[#allocation6] sm:$0xf]
      %v392 = vld [vmem:[#allocation6 + $0x4] sm:$0xf]
      %v393 = vld [vmem:[#allocation6 + $0x8] sm:$0xf]
      %v394 = vld [vmem:[#allocation6 + $0xc] sm:$0xf]
      %v395 = vld [vmem:[%s5] sm:$0x1]
      %v397 = vlaneseq
      %v398 = vshrl.u32 %v397, 7
      %v399 = vsub.s32 0, %v398
      %v400 = vrot.slane %v395, %v399
      %v406 = vunpack.c.l.b16 %v391
      %v407 = vunpack.c.l.b16 %v392
      %v408 = vunpack.c.l.b16 %v393
      %v409 = vunpack.c.l.b16 %v394
      %v410 = vpack.c.b16 %v407, %v406
      %v411 = vpack.c.b16 %v409, %v408
      %v415 = vsel %vm227, %v390, 0
      %417 = vmatprep.subr.bf16.mxu0 0
      %418 = vmatpush1.bf16.msra.mxu0 %v410
      %419 = vmatprep.subr.bf16.mxu0 0
      %420 = vmatpush1.bf16.msra.mxu0 %v411
      %421 = vmatprep.subr.bf16.mxu0 0
      %422 = vmatpush1.bf16.msra.mxu0 0
      %423 = vmatprep.subr.bf16.mxu0 0
      %424 = vmatpush1.bf16.msra.mxu0 0
      %425 = vmatprep.subr.bf16.mxu0 0
      %426 = vmatpush1.bf16.msra.mxu0 0
      %427 = vmatprep.subr.bf16.mxu0 0
      %428 = vmatpush1.bf16.msra.mxu0 0
      %429 = vmatprep.subr.bf16.mxu0 0
      %430 = vmatpush1.bf16.msra.mxu0 0
      %431 = vmatprep.subr.bf16.mxu0 0
      %432 = vmatpush1.bf16.msra.mxu0 0
      %433 = vmatprep.subr.bf16.mxu0 0
      %434 = vmatpush1.bf16.msra.mxu0 0
      %435 = vmatprep.subr.bf16.mxu0 0
      %436 = vmatpush1.bf16.msra.mxu0 0
      %437 = vmatprep.subr.bf16.mxu0 0
      %438 = vmatpush1.bf16.msra.mxu0 0
      %439 = vmatprep.subr.bf16.mxu0 0
      %440 = vmatpush1.bf16.msra.mxu0 0
      %441 = vmatprep.subr.bf16.mxu0 0
      %442 = vmatpush1.bf16.msra.mxu0 0
      %443 = vmatprep.subr.bf16.mxu0 0
      %444 = vmatpush1.bf16.msra.mxu0 0
      %445 = vmatprep.subr.bf16.mxu0 0
      %446 = vmatpush1.bf16.msra.mxu0 0
      %447 = vmatprep.subr.bf16.mxu0 0
      %448 = vmatpush1.bf16.msra.mxu0 0
      %449 = vmatprep.mubr.bf16.mxu0 0
      %450 = vmatmul.mubr.bf16.gmra.mrb[0].mxu0 %v415
      %v451 = vpop.f32.mrb[0].mxu0
      %v452 = vadd.f32 %v400, %v451
      %v453 = vpop.f32.mrb[0].mxu0
      %v454 = vpop.f32.mrb[0].mxu0
      %v455 = vpop.f32.mrb[0].mxu0
      %456 = vdwg.mxu0
      %457 = vst [vmem:[#allocation8] sm:$0xff] %v452
    $region41: #{tpu_custom_call.1} parent=1 // pred_fallthru
      _
    // Predicated region
    $region42: #{tpu_custom_call.1} parent=1 // pred_check
      _
    $region43: #{tpu_custom_call.1} parent=1 // pred_check_branch
      %459 = sbr.rel (0) target = $region45
    $region44: #{tpu_custom_call.1} parent=1 // pred_region
      %s461 = ssub.s32 128, 128
      %462 = vsyncadd [#allocation5], %s461
      %s464 = sshll.u32 [#allocation8], 4
      %s465 = int_to_ptr.vmem [resolvable:$true] %s464
      %467 = dma.vmem_to_hbm [thread:$0]  %s465, 128, %s6, [#allocation5]
    $region45: #{tpu_custom_call.1} parent=1 // pred_fallthru
      _
    // Predicated region
    $region46: #{tpu_custom_call.1} parent=1 // pred_check
      _
    $region47: #{tpu_custom_call.1} parent=1 // pred_check_branch
      %469 = sbr.rel (0) target = $region49
    $region48: #{tpu_custom_call.1} parent=1 // pred_region
      %470 = dma.done [#allocation5], 128
    $region49: #{tpu_custom_call.1} parent=1 // pred_fallthru
      _
    %471 = vsyncpa [#allocation4], 1
    %472 = vsyncpa [#allocation7], 1
    %473 = vsyncpa [#allocation5], 1

</llo_original>
